<compile_context>
chip_gen: v5e
topology: v5e:2x2
jax: 0.10.0
libtpu: 0.0.40
codegen_flags: <defaults>
</compile_context>

<pallas_src>
import math
import functools

import numpy as np
import jax
import jax.numpy as jnp
from jax.experimental import pallas as pl
from jax.experimental.pallas import tpu as pltpu

# ---- model hyper-params (ModelArgs defaults; small seq/batch for the demo) ----
DIM = 64          # args.dim
N_HEADS = 8       # args.n_heads
HEAD_DIM = DIM // N_HEADS   # 8
SEQ = 8           # seqlen (<= args.max_seq_len)
BATCH = 2         # bsz

# MXU operands in bf16 (native full rate on v5e/v6e/v7x MXUs); every VPU/EUP op
# (rotary FMAs, mask add, max/exp, reciprocal) stays f32.  Set to jnp.float32
# if bit-tighter matmuls are required.
MXU_DTYPE = jnp.bfloat16


# ----------------------------------------------------------------------------
# Pallas kernel: single program, whole (tiny) problem resident in VMEM.
# ----------------------------------------------------------------------------
def _attention_kernel(x_ref, w_ref, wo_ref, tab_ref, o_ref, *, B, S, D, H):
    """Fused QKV projection + rotary + multi-head attention + output projection.

    x_ref  : (B*S, D)         tokens (MXU dtype)
    w_ref  : (D, 5*D)         fused projection, 128-lane-aligned column groups
                              [ q | k ] [ qsw | ksw ] [ v ]  (q pre-scaled 1/sqrt(hd))
    wo_ref : (D, D)           output projection (rows permuted to head-major layout)
    tab_ref: (3*B*S + H, W)   ONE packed f32 constant table (single DMA):
                rows [0,   BS)      rotary cos, duplicated for the q|k halves
                rows [BS,  2BS)     rotary sin (sign-flipped on the real half)
                rows [2BS, 3BS)     additive mask: causal + -1e30 across batches
                rows [3BS, 3BS+H)   per-head feature-column indicator [hm | hm]
    o_ref  : (B*S, D)
    """
    BS, BHS, D2 = B * S, B * H * S, 2 * D
    f32 = jnp.float32

    # 1) Fused QKV projection: one lane-dense MXU matmul (bf16 in, f32 acc).
    proj = jnp.dot(x_ref[...], w_ref[...], preferred_element_type=f32)
    qk = proj[:, 0:D2]                  # [q | k]       -- lane-tile aligned
    qksw = proj[:, D2:2 * D2]           # [qsw | ksw]   -- lane-tile aligned
    v = proj[:, 2 * D2:2 * D2 + D]      # (BS, D)       -- lane-tile aligned start

    # 2) Rotary for q and k together: one full-width mul + FMA on the VPU.
    cos = tab_ref[0:BS, 0:D2]
    sin = tab_ref[BS:2 * BS, 0:D2]
    qk_rot = qk * cos + qksw * sin      # [q_rot | k_rot]; 1/sqrt(hd) pre-folded in q
    q = qk_rot[:, 0:D]                  # scores LHS
    k = qk_rot[:, D:D2]                 # one cheap XLU lane shift

    # 3) Block-diagonal (batch x head) expansion with ONE broadcast-multiply each
    #    (no H-way concatenates): rows ordered (b, h, t).
    hm2 = tab_ref[3 * BS:3 * BS + H, 0:D2]          # (H, 2D) = [hm | hm]
    hm = hm2[:, 0:D]                                # (H, D)
    k_big = (k.reshape(B, 1, S, D) * hm[None, :, None, :]).reshape(BHS, D)
    v_ext = jnp.concatenate([v, jnp.ones_like(v)], axis=-1)            # [v | 1]
    vd_big = (v_ext.reshape(B, 1, S, D2) * hm2[None, :, None, :]).reshape(BHS, D2)

    # 4) Scores for ALL batches and heads in one 2-D MXU matmul (q @ K_big^T).
    scores = jax.lax.dot_general(q, k_big, (((1,), (1,)), ((), ())),
                                 preferred_element_type=f32)           # (BS, BHS)
    scores = scores + tab_ref[2 * BS:3 * BS, 0:BHS]                    # causal + cross-batch

    # 5) One batched softmax.  The per-row (cross-head) global max is a valid
    #    stabilizer; cross-batch columns carry -1e30 and vanish.  (A per-head max
    #    would be the robust choice for pathological inter-head logit spreads.)
    m = jnp.max(scores, axis=-1, keepdims=True)
    p = jnp.exp(scores - m)                                            # (BS, BHS) f32

    # 6) PV and the per-head softmax denominator fused in ONE MXU matmul:
    #    nd = [num | den_broadcast]; den recovered with a free XLU roll, divide
    #    runs on the EUP.
    nd = jnp.dot(p.astype(MXU_DTYPE), vd_big.astype(MXU_DTYPE),
                 preferred_element_type=f32)                           # (BS, 2D)
    inv = pl.reciprocal(pltpu.roll(nd, shift=D, axis=1), approx=True)  # [1/den | *]
    attn = (nd * inv)[:, 0:D]                                          # (BS, D)

    # 7) Output projection (wo rows pre-permuted to undo the head-major layout).
    o_ref[...] = jnp.dot(attn.astype(MXU_DTYPE), wo_ref[...],
                         preferred_element_type=f32)


# ----------------------------------------------------------------------------
# One-time host-side constant construction (hoisted out of the hot path).
# ----------------------------------------------------------------------------
def _build_constants(wq, wk, wv, wo, freqs_cos, freqs_sin, mask, B, S):
    D, H = DIM, N_HEADS
    hd, hh = HEAD_DIM, HEAD_DIM // 2
    scale = 1.0 / math.sqrt(hd)

    # Column permutation de-interleaving each head's (re, im) pairs:
    #   new column par*(D/2) + h*hh + i  <-  original column h*hd + 2*i + par
    perm = np.empty(D, dtype=np.int64)
    for par in range(2):
        for h in range(H):
            for i in range(hh):
                perm[par * (D // 2) + h * hh + i] = h * hd + 2 * i + par
    perm_sw = np.concatenate([perm[D // 2:], perm[:D // 2]])   # halves swapped

    wq_n, wk_n, wv_n, wo_n = (np.asarray(w, np.float32) for w in (wq, wk, wv, wo))

    # Fused projection weight with 128-lane-aligned column groups.
    w_fused = np.concatenate(
        [wq_n[:, perm] * scale, wk_n[:, perm],       # [ q | k ]      cols   0..127
         wq_n[:, perm_sw] * scale, wk_n[:, perm_sw], # [ qsw | ksw ]  cols 128..255
         wv_n[:, perm]], axis=1)                     # [ v ]          cols 256..319
    wo_p = wo_n[perm, :]                             # undo the v permutation in wo

    # Rotary tables tiled to (B*S, 2D): identical cos for the q and k halves;
    # sin negated on the first (real) half.
    fc = np.tile(np.asarray(freqs_cos, np.float32), (1, H))      # (S, D/2)
    fs = np.tile(np.asarray(freqs_sin, np.float32), (1, H))
    cosD = np.concatenate([fc, fc], axis=1)                      # (S, D)
    sinD = np.concatenate([-fs, fs], axis=1)                     # (S, D)
    cos2 = np.tile(np.concatenate([cosD, cosD], axis=1), (B, 1)) # (B*S, 2D)
    sin2 = np.tile(np.concatenate([sinD, sinD], axis=1), (B, 1)) # (B*S, 2D)

    # Big additive mask (B*S, B*H*S): causal inside a batch, -1e30 across batches.
    neg = np.float32(-1e30)
    m_np = np.asarray(mask, np.float32)
    big_mask = np.full((B * S, B * H * S), neg, dtype=np.float32)
    for b in range(B):
        for h in range(H):
            big_mask[b * S:(b + 1) * S,
                     b * H * S + h * S:b * H * S + (h + 1) * S] = m_np

    # Head indicator over the permuted feature columns, duplicated: (H, 2D).
    head_of_col = (np.arange(D) % (D // 2)) // hh
    hm = (head_of_col[None, :] == np.arange(H)[:, None]).astype(np.float32)
    hm2 = np.concatenate([hm, hm], axis=1)

    # Pack all small f32 constants into ONE lane-dense table => a single DMA.
    W = max(2 * D, B * H * S)
    pad = lambda a: np.pad(a, ((0, 0), (0, W - a.shape[1])))
    tables = np.concatenate([pad(cos2), pad(sin2), pad(big_mask), pad(hm2)], axis=0)

    return (jnp.asarray(w_fused, MXU_DTYPE),
            jnp.asarray(wo_p, MXU_DTYPE),
            jnp.asarray(tables, jnp.float32))


def make_attention(wq, wk, wv, wo, freqs_cos, freqs_sin, mask, batch, seq):
    """Precompute constants ONCE and return a jitted `attention(x)` callable."""
    B, S, D, H = batch, seq, DIM, N_HEADS
    w_fused, wo_p, tables = _build_constants(wq, wk, wv, wo, freqs_cos, freqs_sin,
                                             mask, B, S)

    kernel = functools.partial(_attention_kernel, B=B, S=S, D=D, H=H)
    vmem = pl.BlockSpec(memory_space=pltpu.MemorySpace.VMEM)
    call = pl.pallas_call(
        kernel,
        out_shape=jax.ShapeDtypeStruct((B * S, D), jnp.float32),
        in_specs=[vmem, vmem, vmem, vmem],   # x, fused weight, wo, packed tables
        out_specs=vmem,
        # No grid: at (B*S, D) = (16, 64) everything fits in VMEM and a grid would
        # only add ~0.35 us/step of pipeline overhead.
        # TODO(synk): for real max_seq_len, switch to a query-tile grid with a
        # flash-style online softmax, dimension_semantics=("parallel", ...) for the
        # two v7x TensorCores, and an explicit vmem_limit_bytes (v7x VMEM = 64 MiB).
    )

    @jax.jit
    def attention(x):
        x2 = x.reshape(B * S, D).astype(MXU_DTYPE)
        return call(x2, w_fused, wo_p, tables).reshape(B, S, D)

    return attention


# ----------------------------------------------------------------------------
# Pure-JAX reference (mirrors the PyTorch forward exactly) for verification
# ----------------------------------------------------------------------------
def attention_reference(x, wq, wk, wv, wo, freqs_cos, freqs_sin, mask):
    B, S, D = x.shape
    H, hd = N_HEADS, HEAD_DIM

    q = (x @ wq).reshape(B, S, H, hd)
    k = (x @ wk).reshape(B, S, H, hd)
    v = (x @ wv).reshape(B, S, H, hd)

    def rope(t):
        tr = t.reshape(B, S, H, hd // 2, 2)
        re, im = tr[..., 0], tr[..., 1]
        c = freqs_cos[None, :, None, :]
        s = freqs_sin[None, :, None, :]
        out_re = re * c - im * s
        out_im = re * s + im * c
        return jnp.stack([out_re, out_im], axis=-1).reshape(B, S, H, hd)

    q = rope(q).transpose(0, 2, 1, 3)
    k = rope(k).transpose(0, 2, 1, 3)
    v = v.transpose(0, 2, 1, 3)

    scores = jnp.matmul(q, k.transpose(0, 1, 3, 2)) / math.sqrt(hd)
    scores = scores + mask[None, None, :, :]
    scores = jax.nn.softmax(scores.astype(jnp.float32), axis=-1)
    out = jnp.matmul(scores, v).transpose(0, 2, 1, 3).reshape(B, S, D)
    return out @ wo


# ----------------------------------------------------------------------------
if __name__ == "__main__":
    key = jax.random.PRNGKey(0)
    kx, kq, kk, kv, ko = jax.random.split(key, 5)

    x = jax.random.normal(kx, (BATCH, SEQ, DIM), dtype=jnp.float32)
    wq = 0.1 * jax.random.normal(kq, (DIM, DIM), dtype=jnp.float32)
    wk = 0.1 * jax.random.normal(kk, (DIM, DIM), dtype=jnp.float32)
    wv = 0.1 * jax.random.normal(kv, (DIM, DIM), dtype=jnp.float32)
    wo = 0.1 * jax.random.normal(ko, (DIM, DIM), dtype=jnp.float32)

    # precompute_freqs_cis (llama-style), start_pos = 0
    theta = 10000.0
    inv_freq = 1.0 / (theta ** (np.arange(0, HEAD_DIM, 2)[: HEAD_DIM // 2] / HEAD_DIM))
    ang = np.outer(np.arange(SEQ), inv_freq)                  # (S, hd//2)
    freqs_cos = jnp.asarray(np.cos(ang), dtype=jnp.float32)
    freqs_sin = jnp.asarray(np.sin(ang), dtype=jnp.float32)

    # causal additive mask (seqlen > 1 path of the Transformer using this module)
    mask = jnp.asarray(np.triu(np.full((SEQ, SEQ), -1e30, dtype=np.float32), k=1))

    # Build once (hoists all constant construction), then the hot path is 1 call.
    attention = make_attention(wq, wk, wv, wo, freqs_cos, freqs_sin, mask,
                               BATCH, SEQ)
    out = jax.block_until_ready(attention(x))

    ref = jax.block_until_ready(
        attention_reference(x, wq, wk, wv, wo, freqs_cos, freqs_sin, mask))

    # bf16 MXU operands (f32 accumulation) => slightly looser tolerance.
    tol = 3e-2 if MXU_DTYPE == jnp.bfloat16 else 2e-3
    np.testing.assert_allclose(np.asarray(out), np.asarray(ref), rtol=tol, atol=tol)
    print("KERNEL_OK")
</pallas_src>

<mosaic_0001>
module attributes {stable_mosaic.version = 11 : i64} {
  func.func @_attention_kernel(%arg0: memref<16x64xbf16, #tpu.memory_space<vmem>>, %arg1: memref<64x320xbf16, #tpu.memory_space<vmem>>, %arg2: memref<64x64xbf16, #tpu.memory_space<vmem>>, %arg3: memref<56x128xf32, #tpu.memory_space<vmem>>, %arg4: memref<16x64xf32, #tpu.memory_space<vmem>>) attributes {dimension_semantics = [], scalar_prefetch = 0 : i64, scratch_operands = 0 : i64, tpu.core_type = #tpu.core_type<tc>} {
    %c0 = arith.constant 0 : index
    %c0_0 = arith.constant 0 : index
    %0 = vector.load %arg0[%c0, %c0_0] : memref<16x64xbf16, #tpu.memory_space<vmem>>, vector<16x64xbf16>
    %c0_1 = arith.constant 0 : index
    %c0_2 = arith.constant 0 : index
    %1 = vector.load %arg1[%c0_1, %c0_2] : memref<64x320xbf16, #tpu.memory_space<vmem>>, vector<64x320xbf16>
    %cst = arith.constant dense<0.000000e+00> : vector<16x320xf32>
    %2 = tpu.matmul %0, %1, %cst {dimension_numbers = #tpu.dot_dimension_numbers<[1], [0], [0], [1], [0, 0, 1, 1], [], []>} : vector<16x64xbf16>, vector<64x320xbf16>, vector<16x320xf32> -> vector<16x320xf32>
    %3 = vector.extract_strided_slice %2 {offsets = [0, 0], sizes = [16, 128], strides = [1, 1]} : vector<16x320xf32> to vector<16x128xf32>
    %4 = vector.extract_strided_slice %2 {offsets = [0, 128], sizes = [16, 128], strides = [1, 1]} : vector<16x320xf32> to vector<16x128xf32>
    %5 = vector.extract_strided_slice %2 {offsets = [0, 256], sizes = [16, 64], strides = [1, 1]} : vector<16x320xf32> to vector<16x64xf32>
    %c0_3 = arith.constant 0 : index
    %c0_4 = arith.constant 0 : index
    %6 = vector.load %arg3[%c0_3, %c0_4] : memref<56x128xf32, #tpu.memory_space<vmem>>, vector<16x128xf32>
    %c16 = arith.constant 16 : index
    %c0_5 = arith.constant 0 : index
    %7 = vector.load %arg3[%c16, %c0_5] : memref<56x128xf32, #tpu.memory_space<vmem>>, vector<16x128xf32>
    %8 = arith.mulf %3, %6 : vector<16x128xf32>
    %9 = arith.mulf %4, %7 : vector<16x128xf32>
    %10 = arith.addf %8, %9 : vector<16x128xf32>
    %11 = vector.extract_strided_slice %10 {offsets = [0, 0], sizes = [16, 64], strides = [1, 1]} : vector<16x128xf32> to vector<16x64xf32>
    %12 = vector.extract_strided_slice %10 {offsets = [0, 64], sizes = [16, 64], strides = [1, 1]} : vector<16x128xf32> to vector<16x64xf32>
    %c48 = arith.constant 48 : index
    %c0_6 = arith.constant 0 : index
    %13 = vector.load %arg3[%c48, %c0_6] : memref<56x128xf32, #tpu.memory_space<vmem>>, vector<8x128xf32>
    %14 = vector.extract_strided_slice %13 {offsets = [0, 0], sizes = [8, 64], strides = [1, 1]} : vector<8x128xf32> to vector<8x64xf32>
    %15 = vector.shape_cast %12 : vector<16x64xf32> to vector<2x1x8x64xf32>
    %16 = vector.shape_cast %14 : vector<8x64xf32> to vector<1x8x1x64xf32>
    %17 = vector.broadcast %15 : vector<2x1x8x64xf32> to vector<2x8x8x64xf32>
    %18 = vector.broadcast %16 : vector<1x8x1x64xf32> to vector<2x8x8x64xf32>
    %19 = arith.mulf %17, %18 : vector<2x8x8x64xf32>
    %20 = vector.shape_cast %19 : vector<2x8x8x64xf32> to vector<128x64xf32>
    %cst_7 = arith.constant 1.000000e+00 : f32
    %21 = vector.broadcast %cst_7 : f32 to vector<16x64xf32>
    %22 = tpu.concatenate %5, %21 in 1 : vector<16x64xf32>, vector<16x64xf32> -> vector<16x128xf32>
    %23 = vector.shape_cast %22 : vector<16x128xf32> to vector<2x1x8x128xf32>
    %24 = vector.shape_cast %13 : vector<8x128xf32> to vector<1x8x1x128xf32>
    %25 = vector.broadcast %23 : vector<2x1x8x128xf32> to vector<2x8x8x128xf32>
    %26 = vector.broadcast %24 : vector<1x8x1x128xf32> to vector<2x8x8x128xf32>
    %27 = arith.mulf %25, %26 : vector<2x8x8x128xf32>
    %28 = vector.shape_cast %27 : vector<2x8x8x128xf32> to vector<128x128xf32>
    %cst_8 = arith.constant dense<0.000000e+00> : vector<16x128xf32>
    %29 = tpu.matmul %11, %20, %cst_8 {dimension_numbers = #tpu.dot_dimension_numbers<[1], [1], [0], [0], [0, 0, 1, 0], [], []>} : vector<16x64xf32>, vector<128x64xf32>, vector<16x128xf32> -> vector<16x128xf32>
    %c32 = arith.constant 32 : index
    %c0_9 = arith.constant 0 : index
    %30 = vector.load %arg3[%c32, %c0_9] : memref<56x128xf32, #tpu.memory_space<vmem>>, vector<16x128xf32>
    %31 = arith.addf %29, %30 : vector<16x128xf32>
    %cst_10 = arith.constant dense<0xFF800000> : vector<16xf32>
    %32 = vector.multi_reduction <maximumf>, %31, %cst_10 [1] : vector<16x128xf32> to vector<16xf32>
    %33 = vector.shape_cast %32 : vector<16xf32> to vector<16x1xf32>
    %34 = vector.broadcast %33 : vector<16x1xf32> to vector<16x128xf32>
    %35 = arith.subf %31, %34 : vector<16x128xf32>
    %36 = math.exp %35 : vector<16x128xf32>
    %37 = arith.truncf %36 : vector<16x128xf32> to vector<16x128xbf16>
    %38 = arith.truncf %28 : vector<128x128xf32> to vector<128x128xbf16>
    %cst_11 = arith.constant dense<0.000000e+00> : vector<16x128xf32>
    %39 = tpu.matmul %37, %38, %cst_11 {dimension_numbers = #tpu.dot_dimension_numbers<[1], [0], [0], [1], [0, 0, 1, 1], [], []>} : vector<16x128xbf16>, vector<128x128xbf16>, vector<16x128xf32> -> vector<16x128xf32>
    %c64_i32 = arith.constant 64 : i32
    %40 = tpu.dynamic_rotate %39 by %c64_i32 dim 1 : vector<16x128xf32>, i32 -> vector<16x128xf32>
    %41 = tpu.reciprocal %40 {approx = true} : vector<16x128xf32> -> vector<16x128xf32>
    %42 = arith.mulf %39, %41 : vector<16x128xf32>
    %43 = vector.extract_strided_slice %42 {offsets = [0, 0], sizes = [16, 64], strides = [1, 1]} : vector<16x128xf32> to vector<16x64xf32>
    %44 = arith.truncf %43 : vector<16x64xf32> to vector<16x64xbf16>
    %c0_12 = arith.constant 0 : index
    %c0_13 = arith.constant 0 : index
    %45 = vector.load %arg2[%c0_12, %c0_13] : memref<64x64xbf16, #tpu.memory_space<vmem>>, vector<64x64xbf16>
    %cst_14 = arith.constant dense<0.000000e+00> : vector<16x64xf32>
    %46 = tpu.matmul %44, %45, %cst_14 {dimension_numbers = #tpu.dot_dimension_numbers<[1], [0], [0], [1], [0, 0, 1, 1], [], []>} : vector<16x64xbf16>, vector<64x64xbf16>, vector<16x64xf32> -> vector<16x64xf32>
    %c0_15 = arith.constant 0 : index
    %c0_16 = arith.constant 0 : index
    %47 = vector.load %arg4[%c0_15, %c0_16] : memref<16x64xf32, #tpu.memory_space<vmem>>, vector<16x64xf32>
    tpu.vector_store %arg4[%c0_15, %c0_16], %46 {strides = array<i32>} : memref<16x64xf32, #tpu.memory_space<vmem>>, vector<16x64xf32>,
    return
  }
}

</mosaic_0001>

<llo_original>
// kernel: attention.1
$region0: #{attention.1}
  #allocation0 [shape = 'u32[]', space=smem, size = 0x4, offset = 0x4, fixed_abs, tag = 'smem constant byte address 0x4 - core index']
  #allocation1 [shape = 'u32[72,128]{1,0:T(1,128)}', space=vmem, size = 0x9000, scoped, tag = 'internal scratch']
  %s0 = inlined_call_operand.vmem [shape: bf16[16,64], index: 0, kind: input, shape index: {}]
  %s1 = inlined_call_operand.hbm [shape: bf16[64,320], index: 1, kind: input, shape index: {}]
  %s2 = inlined_call_operand.hbm [shape: bf16[64,64], index: 2, kind: input, shape index: {}]
  %s3 = inlined_call_operand.hbm [shape: f32[56,128], index: 3, kind: input, shape index: {}]
  %s4 = inlined_call_operand.hbm [shape: f32[16,64], index: 4, kind: output, shape index: {}]
  %s5 = sld [smem:[#allocation0]]
  $region38: #{attention.1} parent=0
    _
  %s7 = ssub.s32 1, %s5
  %s8 = scalar_select 0, %s7, %s5
  $region1: #{attention.1} parent=0
    #allocation2 [shape = 'u8[49152]{0}', space=vmem, size = 0xc000, scoped, tag = 'input window, operand 1, single buffered']
    #allocation3 [shape = 's32[1]{0}', space=sflag, size = 0x4, scoped, tag = 'scoped memory for attention.1']
    #allocation4 [shape = 's32[1]{0}', space=sflag, size = 0x4, scoped, tag = 'scoped memory for attention.1']
    #allocation5 [shape = 'u8[16384]{0}', space=vmem, size = 0x4000, scoped, tag = 'input window, operand 2, single buffered']
    #allocation6 [shape = 's32[1]{0}', space=sflag, size = 0x4, scoped, tag = 'scoped memory for attention.1']
    #allocation7 [shape = 'u8[28672]{0}', space=vmem, size = 0x7000, scoped, tag = 'input window, operand 3, single buffered']
    #allocation8 [shape = 'u8[8192]{0}', space=vmem, size = 0x2000, scoped, tag = 'output window, operand 0, single buffered']
    %9 = vsyncpa [#allocation3], 0
    %10 = vsyncpa [#allocation6], 0
    %11 = vsyncpa [#allocation4], 0
    // Predicated region
    $region2: #{attention.1} parent=1 // pred_check
      _
    $region3: #{attention.1} parent=1 // pred_check_branch
      %13 = sbr.rel (0) target = $region5
    $region4: #{attention.1} parent=1 // pred_region
      _
    $region5: #{attention.1} parent=1 // pred_fallthru
      _
    // Predicated region
    $region6: #{attention.1} parent=1 // pred_check
      _
    $region7: #{attention.1} parent=1 // pred_check_branch
      %15 = sbr.rel (0) target = $region9
    $region8: #{attention.1} parent=1 // pred_region
      %17 = vsyncadd [#allocation3], 0
      %s18 = sshll.u32 %s1, 4
      %s19 = int_to_ptr.hbm [resolvable:$true] %s18
      %s20 = sshll.u32 [#allocation2], 4
      %s21 = int_to_ptr.vmem [resolvable:$true] %s20
      %26 = dma.hbm_to_vmem [thread:$0]  %s19, 1536, %s21, [#allocation3], 192, 192, 12
    $region9: #{attention.1} parent=1 // pred_fallthru
      _
    // Predicated region
    $region10: #{attention.1} parent=1 // pred_check
      _
    $region11: #{attention.1} parent=1 // pred_check_branch
      %28 = sbr.rel (0) target = $region13
    $region12: #{attention.1} parent=1 // pred_region
      %30 = vsyncadd [#allocation6], 0
      %s31 = sshll.u32 %s2, 4
      %s32 = int_to_ptr.hbm [resolvable:$true] %s31
      %s33 = sshll.u32 [#allocation5], 4
      %s34 = int_to_ptr.vmem [resolvable:$true] %s33
      %39 = dma.hbm_to_vmem [thread:$0]  %s32, 512, %s34, [#allocation6], 64, 64, 4
    $region13: #{attention.1} parent=1 // pred_fallthru
      _
    // Predicated region
    $region14: #{attention.1} parent=1 // pred_check
      _
    $region15: #{attention.1} parent=1 // pred_check_branch
      %41 = sbr.rel (0) target = $region17
    $region16: #{attention.1} parent=1 // pred_region
      %43 = vsyncadd [#allocation6], 0
      %s44 = sshll.u32 %s3, 4
      %s45 = int_to_ptr.hbm [resolvable:$true] %s44
      %s46 = sshll.u32 [#allocation7], 4
      %s47 = int_to_ptr.vmem [resolvable:$true] %s46
      %52 = dma.hbm_to_vmem [thread:$0]  %s45, 896, %s47, [#allocation6], 128, 128, 8
    $region17: #{attention.1} parent=1 // pred_fallthru
      _
    // Predicated region
    $region18: #{attention.1} parent=1 // pred_check
      _
    $region19: #{attention.1} parent=1 // pred_check_branch
      %54 = sbr.rel (0) target = $region21
    $region20: #{attention.1} parent=1 // pred_region
      %56 = dma.done [#allocation3], 1536
    $region21: #{attention.1} parent=1 // pred_fallthru
      _
    // Predicated region
    $region22: #{attention.1} parent=1 // pred_check
      _
    $region23: #{attention.1} parent=1 // pred_check_branch
      %58 = sbr.rel (0) target = $region25
    $region24: #{attention.1} parent=1 // pred_region
      %60 = dma.done [#allocation6], 512
    $region25: #{attention.1} parent=1 // pred_fallthru
      _
    // Predicated region
    $region26: #{attention.1} parent=1 // pred_check
      _
    $region27: #{attention.1} parent=1 // pred_check_branch
      %62 = sbr.rel (0) target = $region29
    $region28: #{attention.1} parent=1 // pred_region
      %64 = dma.done [#allocation6], 896
    $region29: #{attention.1} parent=1 // pred_fallthru
      _
    %v66 = vld [vmem:[%s0] sm:$0xf]
    %v67 = vld [vmem:[%s0 + $0x4] sm:$0xf]
    %v68 = vld [vmem:[#allocation2] sm:$0xff]
    %v69 = vld [vmem:[#allocation2 + $0x8] sm:$0xf]
    %v70 = vld [vmem:[#allocation2 + $0xc] sm:$0xff]
    %v71 = vld [vmem:[#allocation2 + $0x14] sm:$0xf]
    %v72 = vld [vmem:[#allocation2 + $0x18] sm:$0xff]
    %v73 = vld [vmem:[#allocation2 + $0x20] sm:$0xf]
    %v74 = vld [vmem:[#allocation2 + $0x24] sm:$0xff]
    %v75 = vld [vmem:[#allocation2 + $0x2c] sm:$0xf]
    %v76 = vld [vmem:[#allocation2 + $0x30] sm:$0xff]
    %v77 = vld [vmem:[#allocation2 + $0x38] sm:$0xf]
    %v78 = vld [vmem:[#allocation2 + $0x3c] sm:$0xff]
    %v79 = vld [vmem:[#allocation2 + $0x44] sm:$0xf]
    %v80 = vld [vmem:[#allocation2 + $0x48] sm:$0xff]
    %v81 = vld [vmem:[#allocation2 + $0x50] sm:$0xf]
    %v82 = vld [vmem:[#allocation2 + $0x54] sm:$0xff]
    %v83 = vld [vmem:[#allocation2 + $0x5c] sm:$0xf]
    %v86 = vunpack.c.l.b16 %v66
    %v87 = vunpack.c.l.b16 %v67
    %v88 = vpack.c.b16 %v87, %v86
    %v105 = vunpack.c.l.b16 %v68
    %v106 = vunpack.c.h.b16 %v68
    %v107 = vunpack.c.l.b16 %v69
    %v108 = vunpack.c.l.b16 %v70
    %v109 = vunpack.c.h.b16 %v70
    %v110 = vunpack.c.l.b16 %v71
    %v111 = vunpack.c.l.b16 %v72
    %v112 = vunpack.c.h.b16 %v72
    %v113 = vunpack.c.l.b16 %v73
    %v114 = vunpack.c.l.b16 %v74
    %v115 = vunpack.c.h.b16 %v74
    %v116 = vunpack.c.l.b16 %v75
    %v117 = vunpack.c.l.b16 %v76
    %v118 = vunpack.c.h.b16 %v76
    %v119 = vunpack.c.l.b16 %v77
    %v120 = vunpack.c.l.b16 %v78
    %v121 = vunpack.c.h.b16 %v78
    %v122 = vunpack.c.l.b16 %v79
    %v123 = vunpack.c.l.b16 %v80
    %v124 = vunpack.c.h.b16 %v80
    %v125 = vunpack.c.l.b16 %v81
    %v126 = vunpack.c.l.b16 %v82
    %v127 = vunpack.c.h.b16 %v82
    %v128 = vunpack.c.l.b16 %v83
    %v129 = vpack.c.b16 %v108, %v105
    %v130 = vpack.c.b16 %v109, %v106
    %v131 = vpack.c.b16 %v110, %v107
    %v132 = vpack.c.b16 %v114, %v111
    %v133 = vpack.c.b16 %v115, %v112
    %v134 = vpack.c.b16 %v116, %v113
    %v135 = vpack.c.b16 %v120, %v117
    %v136 = vpack.c.b16 %v121, %v118
    %v137 = vpack.c.b16 %v122, %v119
    %v138 = vpack.c.b16 %v126, %v123
    %v139 = vpack.c.b16 %v127, %v124
    %v140 = vpack.c.b16 %v128, %v125
    %vm153 = vcmask 523264
    %v155 = vsel %vm153, %v88, 0
    %157 = vmatpush.bf16.msra.mxu0 0
    %158 = vmatpush.bf16.msra.mxu0 0
    %159 = vmatpush.bf16.msra.mxu0 0
    %160 = vmatpush.bf16.msra.mxu0 0
    %161 = vmatpush.bf16.msra.mxu0 %v138
    %162 = vmatpush.bf16.msra.mxu0 %v135
    %163 = vmatpush.bf16.msra.mxu0 %v132
    %164 = vmatpush.bf16.msra.mxu0 %v129
    %165 = vmatmul.bf16.gmra.mxu0 %v155
    %v166 = vpop.f32.mrf.mxu0
    %v167 = vadd.f32 0.0, %v166
    %v168 = vpop.f32.mrf.mxu0
    %v169 = vadd.f32 0.0, %v168
    %170 = vdwg.mxu0
    %171 = vmatpush.bf16.msra.mxu0 0
    %172 = vmatpush.bf16.msra.mxu0 0
    %173 = vmatpush.bf16.msra.mxu0 0
    %174 = vmatpush.bf16.msra.mxu0 0
    %175 = vmatpush.bf16.msra.mxu0 %v139
    %176 = vmatpush.bf16.msra.mxu0 %v136
    %177 = vmatpush.bf16.msra.mxu0 %v133
    %178 = vmatpush.bf16.msra.mxu0 %v130
    %179 = vmatmul.bf16.gmra.mxu0 %v155
    %v180 = vpop.f32.mrf.mxu0
    %v181 = vadd.f32 0.0, %v180
    %v182 = vpop.f32.mrf.mxu0
    %v183 = vadd.f32 0.0, %v182
    %184 = vdwg.mxu0
    %185 = vmatpush.bf16.msra.mxu0 0
    %186 = vmatpush.bf16.msra.mxu0 0
    %187 = vmatpush.bf16.msra.mxu0 0
    %188 = vmatpush.bf16.msra.mxu0 0
    %189 = vmatpush.bf16.msra.mxu0 %v140
    %190 = vmatpush.bf16.msra.mxu0 %v137
    %191 = vmatpush.bf16.msra.mxu0 %v134
    %192 = vmatpush.bf16.msra.mxu0 %v131
    %193 = vmatmul.bf16.gmra.mxu0 %v155
    %v194 = vpop.f32.mrf.mxu0
    %v195 = vadd.f32 0.0, %v194
    %v196 = vpop.f32.mrf.mxu0
    %v197 = vadd.f32 0.0, %v196
    %198 = vdwg.mxu0
    %v199 = vld [vmem:[#allocation7] sm:$0xff]
    %v200 = vld [vmem:[#allocation7 + $0x8] sm:$0xff]
    %v201 = vld [vmem:[#allocation7 + $0x10] sm:$0xff]
    %v202 = vld [vmem:[#allocation7 + $0x18] sm:$0xff]
    %v203 = vmul.f32 %v167, %v199
    %v204 = vmul.f32 %v169, %v200
    %v205 = vmul.f32 %v181, %v201
    %v206 = vmul.f32 %v183, %v202
    %v207 = vadd.f32 %v203, %v205
    %v208 = vadd.f32 %v204, %v206
    %v209 = vld [vmem:[#allocation7 + $0x30] sm:$0xff]
    %v211 = vrot.slane %v209, 1
    %v212 = vrot.slane %v209, 2
    %v213 = vrot.slane %v209, 3
    %v214 = vrot.slane %v209, 4
    %v215 = vrot.slane %v209, 5
    %v216 = vrot.slane %v209, 6
    %v217 = vrot.slane %v209, 7
    %v218 = vperm.slane %v209, 0
    %v219 = vperm.slane %v211, 0
    %v220 = vperm.slane %v212, 0
    %v221 = vperm.slane %v213, 0
    %v222 = vperm.slane %v214, 0
    %v223 = vperm.slane %v215, 0
    %v224 = vperm.slane %v216, 0
    %v225 = vperm.slane %v217, 0
    %226 = vrot.lane.b32.xlu0 %v218, 64
    %v227 = vpop.permute.xlu0 %226
    %228 = vrot.lane.b32.xlu0 %v219, 64
    %v229 = vpop.permute.xlu0 %228
    %230 = vrot.lane.b32.xlu0 %v220, 64
    %v231 = vpop.permute.xlu0 %230
    %232 = vrot.lane.b32.xlu0 %v221, 64
    %v233 = vpop.permute.xlu0 %232
    %234 = vrot.lane.b32.xlu0 %v222, 64
    %v235 = vpop.permute.xlu0 %234
    %236 = vrot.lane.b32.xlu0 %v223, 64
    %v237 = vpop.permute.xlu0 %236
    %238 = vrot.lane.b32.xlu0 %v224, 64
    %v239 = vpop.permute.xlu0 %238
    %240 = vrot.lane.b32.xlu0 %v225, 64
    %v241 = vpop.permute.xlu0 %240
    %v250 = vmul.f32 %v207, %v227
    %v251 = vmul.f32 %v207, %v229
    %v252 = vmul.f32 %v207, %v231
    %v253 = vmul.f32 %v207, %v233
    %v254 = vmul.f32 %v207, %v235
    %v255 = vmul.f32 %v207, %v237
    %v256 = vmul.f32 %v207, %v239
    %v257 = vmul.f32 %v207, %v241
    %v258 = vmul.f32 %v208, %v227
    %v259 = vmul.f32 %v208, %v229
    %v260 = vmul.f32 %v208, %v231
    %v261 = vmul.f32 %v208, %v233
    %v262 = vmul.f32 %v208, %v235
    %v263 = vmul.f32 %v208, %v237
    %v264 = vmul.f32 %v208, %v239
    %v265 = vmul.f32 %v208, %v241
    %v266 = vsel %vm153, %v195, 1.0
    %v267 = vsel %vm153, %v197, 1.0
    %v276 = vmul.f32 %v266, %v218
    %v277 = vmul.f32 %v266, %v219
    %v278 = vmul.f32 %v266, %v220
    %v279 = vmul.f32 %v266, %v221
    %v280 = vmul.f32 %v266, %v222
    %v281 = vmul.f32 %v266, %v223
    %v282 = vmul.f32 %v266, %v224
    %v283 = vmul.f32 %v266, %v225
    %v284 = vmul.f32 %v267, %v218
    %v285 = vmul.f32 %v267, %v219
    %v286 = vmul.f32 %v267, %v220
    %v287 = vmul.f32 %v267, %v221
    %v288 = vmul.f32 %v267, %v222
    %v289 = vmul.f32 %v267, %v223
    %v290 = vmul.f32 %v267, %v224
    %v291 = vmul.f32 %v267, %v225
    %v292 = vld [vmem:[#allocation7 + $0x20] sm:$0xff]
    %v293 = vld [vmem:[#allocation7 + $0x28] sm:$0xff]
    %310 = vrot.lane.b32.xlu0 %v250, 64
    %v311 = vpop.permute.xlu0 %310
    %312 = vrot.lane.b32.xlu0 %v251, 64
    %v313 = vpop.permute.xlu0 %312
    %314 = vrot.lane.b32.xlu0 %v252, 64
    %v315 = vpop.permute.xlu0 %314
    %316 = vrot.lane.b32.xlu0 %v253, 64
    %v317 = vpop.permute.xlu0 %316
    %318 = vrot.lane.b32.xlu0 %v254, 64
    %v319 = vpop.permute.xlu0 %318
    %320 = vrot.lane.b32.xlu0 %v255, 64
    %v321 = vpop.permute.xlu0 %320
    %322 = vrot.lane.b32.xlu0 %v256, 64
    %v323 = vpop.permute.xlu0 %322
    %324 = vrot.lane.b32.xlu0 %v257, 64
    %v325 = vpop.permute.xlu0 %324
    %326 = vrot.lane.b32.xlu0 %v258, 64
    %v327 = vpop.permute.xlu0 %326
    %328 = vrot.lane.b32.xlu0 %v259, 64
    %v329 = vpop.permute.xlu0 %328
    %330 = vrot.lane.b32.xlu0 %v260, 64
    %v331 = vpop.permute.xlu0 %330
    %332 = vrot.lane.b32.xlu0 %v261, 64
    %v333 = vpop.permute.xlu0 %332
    %334 = vrot.lane.b32.xlu0 %v262, 64
    %v335 = vpop.permute.xlu0 %334
    %336 = vrot.lane.b32.xlu0 %v263, 64
    %v337 = vpop.permute.xlu0 %336
    %338 = vrot.lane.b32.xlu0 %v264, 64
    %v339 = vpop.permute.xlu0 %338
    %340 = vrot.lane.b32.xlu0 %v265, 64
    %v341 = vpop.permute.xlu0 %340
    %v343 = vsel %vm153, %v207, 0
    %v346 = vsel %vm153, %v208, 0
    %v348 = vsel %vm153, %v311, 0
    %v350 = vsel %vm153, %v313, 0
    %v352 = vsel %vm153, %v315, 0
    %v354 = vsel %vm153, %v317, 0
    %v356 = vsel %vm153, %v319, 0
    %v358 = vsel %vm153, %v321, 0
    %v360 = vsel %vm153, %v323, 0
    %v362 = vsel %vm153, %v325, 0
    %v364 = vsel %vm153, %v327, 0
    %v366 = vsel %vm153, %v329, 0
    %v368 = vsel %vm153, %v331, 0
    %v370 = vsel %vm153, %v333, 0
    %v372 = vsel %vm153, %v335, 0
    %v374 = vsel %vm153, %v337, 0
    %v376 = vsel %vm153, %v339, 0
    %v378 = vsel %vm153, %v341, 0
    %380 = vmatpush.xpose.msra.mxu0 %v378
    %381 = vmatpush.xpose.msra.mxu0 %v376
    %382 = vmatpush.xpose.msra.mxu0 %v374
    %383 = vmatpush.xpose.msra.mxu0 %v372
    %384 = vmatpush.xpose.msra.mxu0 %v370
    %385 = vmatpush.xpose.msra.mxu0 %v368
    %386 = vmatpush.xpose.msra.mxu0 %v366
    %387 = vmatpush.xpose.msra.mxu0 %v364
    %388 = vmatpush.xpose.msra.mxu0 %v362
    %389 = vmatpush.xpose.msra.mxu0 %v360
    %390 = vmatpush.xpose.msra.mxu0 %v358
    %391 = vmatpush.xpose.msra.mxu0 %v356
    %392 = vmatpush.xpose.msra.mxu0 %v354
    %393 = vmatpush.xpose.msra.mxu0 %v352
    %394 = vmatpush.xpose.msra.mxu0 %v350
    %395 = vmatpush.xpose.msra.mxu0 %v348
    %396 = vmatmul.f32.gmra.mxu0 %v343
    %v397 = vpop.f32.mrf.mxu0
    %v398 = vadd.f32 %v292, %v397
    %399 = vmatmul.f32.gmra.mxu0 %v346
    %v400 = vpop.f32.mrf.mxu0
    %v401 = vadd.f32 %v293, %v400
    %402 = vdwg.mxu0
    %403 = vmax.xlane.f32.xlu0 %v398
    %v404 = vpop.xlane.xlu0 %403
    %405 = vmax.xlane.f32.xlu0 %v401
    %v406 = vpop.xlane.xlu0 %405
    %v407 = vsub.f32 %v398, %v404
    %v408 = vsub.f32 %v401, %v406
    %v409 = vmul.f32 %v407, 1.442695
    %v410 = vpow.pop %v409
    %v411 = vmul.f32 %v408, 1.442695
    %v412 = vpow.pop %v411
    %v413 = vpack.c.bf16 %v412, %v410
    %v414 = vpack.c.bf16 %v277, %v276
    %v415 = vpack.c.bf16 %v279, %v278
    %v416 = vpack.c.bf16 %v281, %v280
    %v417 = vpack.c.bf16 %v283, %v282
    %v418 = vpack.c.bf16 %v285, %v284
    %v419 = vpack.c.bf16 %v287, %v286
    %v420 = vpack.c.bf16 %v289, %v288
    %v421 = vpack.c.bf16 %v291, %v290
    %422 = vmatpush.bf16.msra.mxu0 %v421
    %423 = vmatpush.bf16.msra.mxu0 %v420
    %424 = vmatpush.bf16.msra.mxu0 %v419
    %425 = vmatpush.bf16.msra.mxu0 %v418
    %426 = vmatpush.bf16.msra.mxu0 %v417
    %427 = vmatpush.bf16.msra.mxu0 %v416
    %428 = vmatpush.bf16.msra.mxu0 %v415
    %429 = vmatpush.bf16.msra.mxu0 %v414
    %430 = vmatmul.bf16.gmra.mxu0 %v413
    %v431 = vpop.f32.mrf.mxu0
    %v432 = vadd.f32 0.0, %v431
    %v433 = vpop.f32.mrf.mxu0
    %v434 = vadd.f32 0.0, %v433
    %435 = vdwg.mxu0
    %436 = vrot.lane.b32.xlu0 %v432, 64
    %v437 = vpop.permute.xlu0 %436
    %438 = vrot.lane.b32.xlu0 %v434, 64
    %v439 = vpop.permute.xlu0 %438
    %v440 = vrcp.pop %v437
    %v441 = vrcp.pop %v439
    %v442 = vmul.f32 %v432, %v440
    %v443 = vmul.f32 %v434, %v441
    %v444 = vpack.c.bf16 %v443, %v442
    %v445 = vld [vmem:[#allocation5] sm:$0xf]
    %v446 = vld [vmem:[#allocation5 + $0x4] sm:$0xf]
    %v447 = vld [vmem:[#allocation5 + $0x8] sm:$0xf]
    %v448 = vld [vmem:[#allocation5 + $0xc] sm:$0xf]
    %v449 = vld [vmem:[#allocation5 + $0x10] sm:$0xf]
    %v450 = vld [vmem:[#allocation5 + $0x14] sm:$0xf]
    %v451 = vld [vmem:[#allocation5 + $0x18] sm:$0xf]
    %v452 = vld [vmem:[#allocation5 + $0x1c] sm:$0xf]
    %v461 = vunpack.c.l.b16 %v445
    %v462 = vunpack.c.l.b16 %v446
    %v463 = vunpack.c.l.b16 %v447
    %v464 = vunpack.c.l.b16 %v448
    %v465 = vunpack.c.l.b16 %v449
    %v466 = vunpack.c.l.b16 %v450
    %v467 = vunpack.c.l.b16 %v451
    %v468 = vunpack.c.l.b16 %v452
    %v469 = vpack.c.b16 %v462, %v461
    %v470 = vpack.c.b16 %v464, %v463
    %v471 = vpack.c.b16 %v466, %v465
    %v472 = vpack.c.b16 %v468, %v467
    %v478 = vsel %vm153, %v444, 0
    %480 = vmatpush.bf16.msra.mxu0 0
    %481 = vmatpush.bf16.msra.mxu0 0
    %482 = vmatpush.bf16.msra.mxu0 0
    %483 = vmatpush.bf16.msra.mxu0 0
    %484 = vmatpush.bf16.msra.mxu0 %v472
    %485 = vmatpush.bf16.msra.mxu0 %v471
    %486 = vmatpush.bf16.msra.mxu0 %v470
    %487 = vmatpush.bf16.msra.mxu0 %v469
    %488 = vmatmul.bf16.gmra.mxu0 %v478
    %v489 = vpop.f32.mrf.mxu0
    %v490 = vadd.f32 0.0, %v489
    %v491 = vpop.f32.mrf.mxu0
    %v492 = vadd.f32 0.0, %v491
    %493 = vdwg.mxu0
    %494 = vst.msk [vmem:[#allocation8] sm:$0xff] %vm153, %v490
    %495 = vst.msk [vmem:[#allocation8 + $0x8] sm:$0xff] %vm153, %v492
    // Predicated region
    $region30: #{attention.1} parent=1 // pred_check
      _
    $region31: #{attention.1} parent=1 // pred_check_branch
      %497 = sbr.rel (0) target = $region33
    $region32: #{attention.1} parent=1 // pred_region
      %499 = vsyncadd [#allocation4], 0
      %s500 = sshll.u32 [#allocation8], 4
      %s501 = int_to_ptr.vmem [resolvable:$true] %s500
      %s502 = sshll.u32 %s4, 4
      %s503 = int_to_ptr.hbm [resolvable:$true] %s502
      %508 = dma.vmem_to_hbm [thread:$0]  %s501, 256, %s503, [#allocation4], 128, 128, 8
    $region33: #{attention.1} parent=1 // pred_fallthru
      _
    // Predicated region
    $region34: #{attention.1} parent=1 // pred_check
      _
    $region35: #{attention.1} parent=1 // pred_check_branch
      %510 = sbr.rel (0) target = $region37
    $region36: #{attention.1} parent=1 // pred_region
      %512 = dma.done [#allocation4], 256
    $region37: #{attention.1} parent=1 // pred_fallthru
      _
    %513 = vsyncpa [#allocation3], 1
    %514 = vsyncpa [#allocation6], 1
    %515 = vsyncpa [#allocation4], 1

</llo_original>
